<compile_context>
chip_gen: v7x
topology: tpu7x:2x2x1
jax: 0.10.0
libtpu: 0.0.40
codegen_flags: <defaults>
</compile_context>

<pallas_src>
import functools
import math

import jax
import jax.numpy as jnp
from jax.experimental import pallas as pl
from jax.experimental.pallas import tpu as pltpu


def _label_smoothing_kernel(x_ref, tgt_ref, kl_ref, *, size, padding_idx,
                            smoothing):
    """Per-row KL(p || softmax(x)) with p = softmax(smoothed one-hot), closed form."""
    x = x_ref[...].astype(jnp.float32)          # (TN, V) logits, f32 math
    tgt = tgt_ref[...]                          # (TN, 1)  int32 labels
    tn, v = x.shape

    # ---- log-softmax(x) statistics: the only V-wide exp pass ---------------
    x_max = jnp.max(x, axis=-1, keepdims=True)                         # (TN,1)
    lse = jnp.log(jnp.sum(jnp.exp(x - x_max), axis=-1, keepdims=True))  # (TN,1)
    sum_x = jnp.sum(x, axis=-1, keepdims=True)                         # (TN,1)

    # x[row, target[row]] via lane-iota compare + masked row sum
    col = jax.lax.broadcasted_iota(jnp.int32, (tn, v), 1)
    x_tgt = jnp.sum(jnp.where(col == tgt, x, 0.0), axis=-1, keepdims=True)

    log_q_tgt = x_tgt - x_max - lse                                    # (TN,1)
    sum_log_q = sum_x - float(v) * (x_max + lse)                       # (TN,1)

    # ---- closed-form p = softmax(true_dist) (trace-time scalar constants) --
    confidence = 1.0 - smoothing
    fill = smoothing / (size - 2)
    z = math.exp(confidence) + (v - 1) * math.exp(fill)
    p_conf = math.exp(confidence) / z
    p_fill = math.exp(fill) / z
    # sum_j p_j * log p_j for a non-padding row
    neg_ent = p_conf * math.log(p_conf) + (v - 1) * p_fill * math.log(p_fill)

    # KL_row = sum_j p_j log p_j - [ (p_conf - p_fill) * log_q[target]
    #                                + p_fill * sum_j log_q[j] ]
    kl_row = neg_ent - ((p_conf - p_fill) * log_q_tgt + p_fill * sum_log_q)

    # padding rows: true_dist row is all-zero -> softmax gives uniform 1/V
    kl_pad = -math.log(float(v)) - (1.0 / v) * sum_log_q

    kl_ref[...] = jnp.where(tgt == padding_idx, kl_pad, kl_row)


def label_smoothing_loss(x, target, *, size, padding_idx=0, smoothing=0.1, T=4,
                         tile_n=None):
    """Pallas forward of the PyTorch LabelSmoothing module (scalar loss)."""
    N, V = x.shape
    assert V == size, "x.shape[1] must equal `size`"
    assert size > 2, "label smoothing requires size > 2"

    # ---- row-tile size: fits double-buffered in VMEM on v5e/v6e/v7x --------
    itemsize = jnp.dtype(x.dtype).itemsize
    if tile_n is None:
        budget = 4 * 1024 * 1024                  # per x tile (Pallas double-buffers)
        tile_n = max(8, min(1024, budget // max(1, V * itemsize)))
    tile_n = max(8, (tile_n // 8) * 8)            # sublane-aligned
    n_ceil8 = ((N + 7) // 8) * 8
    tile_n = min(tile_n, n_ceil8)

    n_pad = pl.cdiv(N, tile_n) * tile_n
    num_tiles = n_pad // tile_n

    if n_pad != N:                                # pad rows; sliced off after the call
        x = jnp.pad(x, ((0, n_pad - N), (0, 0)))
        target = jnp.pad(target, (0, n_pad - N), constant_values=padding_idx)
    tgt2d = target.astype(jnp.int32).reshape(n_pad, 1)

    kernel = functools.partial(_label_smoothing_kernel, size=size,
                               padding_idx=padding_idx, smoothing=smoothing)

    kl_rows = pl.pallas_call(
        kernel,
        out_shape=jax.ShapeDtypeStruct((n_pad, 1), jnp.float32),
        grid_spec=pltpu.PrefetchScalarGridSpec(
            num_scalar_prefetch=0,
            grid=(num_tiles,),
            in_specs=[
                pl.BlockSpec((tile_n, V), lambda i: (i, 0)),   # logits tile
                pl.BlockSpec((tile_n, 1), lambda i: (i, 0)),   # labels tile
            ],
            out_specs=pl.BlockSpec((tile_n, 1), lambda i: (i, 0)),
        ),
        compiler_params=pltpu.CompilerParams(
            dimension_semantics=("parallel",),        # lets v7x use both TCs
            vmem_limit_bytes=32 * 1024 * 1024,        # above v5e default, safe on v7x
        ),
    )(x, tgt2d)

    # final reduction + temperature scale in the wrapper (trivial XLA reduce)
    return jnp.sum(kl_rows[:N, 0]) * float(T * T)


def _reference_loss(x, target, *, size, padding_idx=0, smoothing=0.1, T=4):
    """Pure-JAX reference mirroring the PyTorch forward exactly."""
    confidence = 1.0 - smoothing
    fill = smoothing / (size - 2)
    N, V = x.shape
    td = jnp.full((N, V), fill, dtype=jnp.float32)
    td = td.at[jnp.arange(N), target].set(confidence)
    td = jnp.where((target == padding_idx)[:, None], 0.0, td)
    p = jax.nn.softmax(td, axis=-1)
    log_q = jax.nn.log_softmax(x.astype(jnp.float32), axis=-1)
    return jnp.sum(p * (jnp.log(p) - log_q)) * (T * T)


if __name__ == "__main__":
    key = jax.random.PRNGKey(0)
    k0, k1, k2, k3 = jax.random.split(key, 4)

    # Case 1: single tile (N = batch*seq = 8 rows, vocab 32).
    N, SIZE = 8, 32
    x = jax.random.normal(k0, (N, SIZE), dtype=jnp.float32)
    target = jax.random.randint(k1, (N,), 0, SIZE, dtype=jnp.int32)
    target = target.at[3].set(0)          # force a padding row

    loss = label_smoothing_loss(x, target, size=SIZE, padding_idx=0,
                                smoothing=0.1, T=4)
    jax.block_until_ready(loss)
    ref = _reference_loss(x, target, size=SIZE, padding_idx=0,
                          smoothing=0.1, T=4)
    assert jnp.allclose(loss, ref, rtol=1e-4, atol=1e-4), (loss, ref)

    # Case 2: multi-tile grid + ragged N (N=20 not a multiple of tile_n=8,
    # V=160 not a multiple of 128) to exercise the tiled/padded path.
    N2, SIZE2 = 20, 160
    x2 = jax.random.normal(k2, (N2, SIZE2), dtype=jnp.float32)
    t2 = jax.random.randint(k3, (N2,), 0, SIZE2, dtype=jnp.int32)
    t2 = t2.at[0].set(0)                  # force a padding row
    loss2 = label_smoothing_loss(x2, t2, size=SIZE2, padding_idx=0,
                                 smoothing=0.1, T=4, tile_n=8)
    jax.block_until_ready(loss2)
    ref2 = _reference_loss(x2, t2, size=SIZE2, padding_idx=0,
                           smoothing=0.1, T=4)
    assert jnp.allclose(loss2, ref2, rtol=1e-4, atol=1e-4), (loss2, ref2)

    print("KERNEL_OK")
</pallas_src>

<mosaic_0001>
module attributes {stable_mosaic.version = 11 : i64} {
  func.func @_label_smoothing_kernel(%arg0: i32, %arg1: memref<8x32xf32, #tpu.memory_space<vmem>>, %arg2: memref<8x1xi32, #tpu.memory_space<vmem>>, %arg3: memref<8x1xf32, #tpu.memory_space<vmem>>) attributes {dimension_semantics = [#tpu.dimension_semantics<parallel>], iteration_bounds = array<i64: 1>, scalar_prefetch = 0 : i64, scratch_operands = 0 : i64, tpu.core_type = #tpu.core_type<tc>, window_params = [{transform_indices = @transform_0, window_bounds = array<i64: 8, 32>}, {transform_indices = @transform_1, window_bounds = array<i64: 8, 1>}, {transform_indices = @transform_2, window_bounds = array<i64: 8, 1>}]} {
    %c0 = arith.constant 0 : index
    %c0_0 = arith.constant 0 : index
    %0 = vector.load %arg1[%c0, %c0_0] : memref<8x32xf32, #tpu.memory_space<vmem>>, vector<8x32xf32>
    %c0_1 = arith.constant 0 : index
    %c0_2 = arith.constant 0 : index
    %1 = vector.load %arg2[%c0_1, %c0_2] : memref<8x1xi32, #tpu.memory_space<vmem>>, vector<8x1xi32>
    %cst = arith.constant dense<0xFF800000> : vector<8xf32>
    %2 = vector.multi_reduction <maximumf>, %0, %cst [1] : vector<8x32xf32> to vector<8xf32>
    %3 = vector.shape_cast %2 : vector<8xf32> to vector<8x1xf32>
    %4 = vector.broadcast %3 : vector<8x1xf32> to vector<8x32xf32>
    %5 = arith.subf %0, %4 : vector<8x32xf32>
    %6 = math.exp %5 : vector<8x32xf32>
    %cst_3 = arith.constant dense<0.000000e+00> : vector<8xf32>
    %7 = vector.multi_reduction <add>, %6, %cst_3 [1] : vector<8x32xf32> to vector<8xf32>
    %8 = vector.shape_cast %7 : vector<8xf32> to vector<8x1xf32>
    %9 = math.log %8 : vector<8x1xf32>
    %cst_4 = arith.constant dense<0.000000e+00> : vector<8xf32>
    %10 = vector.multi_reduction <add>, %0, %cst_4 [1] : vector<8x32xf32> to vector<8xf32>
    %11 = vector.shape_cast %10 : vector<8xf32> to vector<8x1xf32>
    %12 = tpu.iota {dimensions = array<i32: 1>} : vector<8x32xi32>
    %13 = vector.broadcast %1 : vector<8x1xi32> to vector<8x32xi32>
    %14 = arith.cmpi eq, %12, %13 : vector<8x32xi32>
    %cst_5 = arith.constant 0.000000e+00 : f32
    %15 = vector.broadcast %cst_5 : f32 to vector<8x32xf32>
    %16 = arith.select %14, %0, %15 : vector<8x32xi1>, vector<8x32xf32>
    %cst_6 = arith.constant dense<0.000000e+00> : vector<8xf32>
    %17 = vector.multi_reduction <add>, %16, %cst_6 [1] : vector<8x32xf32> to vector<8xf32>
    %18 = vector.shape_cast %17 : vector<8xf32> to vector<8x1xf32>
    %19 = arith.subf %18, %3 : vector<8x1xf32>
    %20 = arith.subf %19, %9 : vector<8x1xf32>
    %21 = arith.addf %3, %9 : vector<8x1xf32>
    %cst_7 = arith.constant 3.200000e+01 : f32
    %22 = vector.broadcast %cst_7 : f32 to vector<8x1xf32>
    %23 = arith.mulf %22, %21 : vector<8x1xf32>
    %24 = arith.subf %11, %23 : vector<8x1xf32>
    %cst_8 = arith.constant 0.0433888361 : f32
    %25 = vector.broadcast %cst_8 : f32 to vector<8x1xf32>
    %26 = arith.mulf %25, %20 : vector<8x1xf32>
    %cst_9 = arith.constant 0.0298940986 : f32
    %27 = vector.broadcast %cst_9 : f32 to vector<8x1xf32>
    %28 = arith.mulf %27, %24 : vector<8x1xf32>
    %29 = arith.addf %26, %28 : vector<8x1xf32>
    %cst_10 = arith.constant -3.44438386 : f32
    %30 = vector.broadcast %cst_10 : f32 to vector<8x1xf32>
    %31 = arith.subf %30, %29 : vector<8x1xf32>
    %cst_11 = arith.constant 3.125000e-02 : f32
    %32 = vector.broadcast %cst_11 : f32 to vector<8x1xf32>
    %33 = arith.mulf %32, %24 : vector<8x1xf32>
    %cst_12 = arith.constant -3.46573591 : f32
    %34 = vector.broadcast %cst_12 : f32 to vector<8x1xf32>
    %35 = arith.subf %34, %33 : vector<8x1xf32>
    %c0_i32 = arith.constant 0 : i32
    %36 = vector.broadcast %c0_i32 : i32 to vector<8x1xi32>
    %37 = arith.cmpi eq, %1, %36 : vector<8x1xi32>
    %38 = arith.select %37, %35, %31 : vector<8x1xi1>, vector<8x1xf32>
    %c0_13 = arith.constant 0 : index
    %c0_14 = arith.constant 0 : index
    %39 = vector.load %arg3[%c0_13, %c0_14] : memref<8x1xf32, #tpu.memory_space<vmem>>, vector<8x1xf32>
    tpu.vector_store %arg3[%c0_13, %c0_14], %38 {strides = array<i32>} : memref<8x1xf32, #tpu.memory_space<vmem>>, vector<8x1xf32>,
    return
  }
  func.func @transform_0(%arg0: i32) -> (i32, i32) {
    %c0_i32 = arith.constant 0 : i32
    %c0_i32_0 = arith.constant 0 : i32
    return %arg0, %c0_i32 : i32, i32
  }
  func.func @transform_1(%arg0: i32) -> (i32, i32) {
    %c0_i32 = arith.constant 0 : i32
    %c0_i32_0 = arith.constant 0 : i32
    return %arg0, %c0_i32 : i32, i32
  }
  func.func @transform_2(%arg0: i32) -> (i32, i32) {
    %c0_i32 = arith.constant 0 : i32
    %c0_i32_0 = arith.constant 0 : i32
    return %arg0, %c0_i32 : i32, i32
  }
}

</mosaic_0001>

<llo_original>
// kernel: tpu_custom_call.1
$region0: #{tpu_custom_call.1}
  #allocation0 [shape = 'u32[]', space=smem, size = 0x4, offset = 0x4, fixed_abs, tag = 'smem constant byte address 0x4 - core index']
  #allocation1 [shape = 'u32[144,128]{1,0:T(1,128)}', space=vmem, size = 0x12000, scoped, tag = 'internal scratch']
  %s0 = inlined_call_operand.vmem [shape: f32[8,32], index: 0, kind: input, shape index: {}]
  %s1 = inlined_call_operand.vmem [shape: s32[8,1], index: 1, kind: input, shape index: {}]
  %s2 = inlined_call_operand.vmem [shape: f32[8,1], index: 2, kind: output, shape index: {}]
  %s3 = sld [smem:[#allocation0]]
  $region18: #{tpu_custom_call.1} parent=0
    _
  %s5 = ssub.s32 1, %s3
  %s6 = scalar_select 0, %s5, %s3
  // Predicated region
  $region2: #{tpu_custom_call.1} parent=0 // pred_check
    _
  $region3: #{tpu_custom_call.1} parent=0 // pred_check_branch
    %8 = sbr.rel (0) target = $region5
  $region4: #{tpu_custom_call.1} parent=0 // pred_region
    _
  $region5: #{tpu_custom_call.1} parent=0 // pred_fallthru
    _
  // Predicated region
  $region6: #{tpu_custom_call.1} parent=0 // pred_check
    _
  $region7: #{tpu_custom_call.1} parent=0 // pred_check_branch
    %10 = sbr.rel (0) target = $region9
  $region8: #{tpu_custom_call.1} parent=0 // pred_region
    _
  $region9: #{tpu_custom_call.1} parent=0 // pred_fallthru
    _
  %v11 = vld [vmem:[%s0] sm:$0xff]
  %v12 = vld [vmem:[%s1] sm:$0xff]
  %vm13 = vcmask 261120
  %v14 = vsel %vm13, %v11, -inf
  %15 = vmax.xlane.f32.xlu0 %v14
  %v16 = vpop.xlane.xlu0 %15
  %v17 = vsub.f32 %v11, %v16
  %v18 = vmul.f32 %v17, 1.442695
  %v19 = vpow.pop %v18
  %v20 = vsel %vm13, %v19, 0.0
  %21 = vadd.xlane.f32.xlu0 %v20
  %v22 = vpop.xlane.xlu0 %21
  %v23 = vlog2.pop %v22
  %v24 = vmul.f32 %v23, 0.6931472
  %v25 = vsel %vm13, %v11, 0.0
  %26 = vadd.xlane.f32.xlu0 %v25
  %v27 = vpop.xlane.xlu0 %26
  %v28 = vlaneseq
  %v29 = vand.u32 %v28, 127
  %30 = vset.pattern.permute.xlu0 0
  %31 = vperm.xlu0 %30, %v12
  %v32 = vpop.permute.xlu0 %31
  %vm33 = vcmp.eq.s32.totalorder %v29, %v32
  %v34 = vsel %vm33, %v11, 0.0
  %v35 = vsel %vm13, %v34, 0.0
  %36 = vadd.xlane.f32.xlu0 %v35
  %v37 = vpop.xlane.xlu0 %36
  %v38 = vsub.f32 %v37, %v16
  %v39 = vsub.f32 %v38, %v24
  %v40 = vadd.f32 %v16, %v24
  %v41 = vmul.f32 %v40, 32.0
  %v42 = vsub.f32 %v27, %v41
  %v43 = vmul.f32 %v39, 0.043388836
  %v44 = vmul.f32 %v42, 0.029894099
  %v45 = vadd.f32 %v43, %v44
  %v46 = vsub.f32 -3.4443839, %v45
  %v47 = vmul.f32 %v42, 0.03125
  %v48 = vsub.f32 -3.465736, %v47
  %vm49 = vcmp.eq.s32.totalorder %v12, 0
  %v50 = vsel %vm49, %v48, %v46
  %vm51 = vcmask 7168
  %52 = vst.msk [vmem:[%s2] sm:$0xff] %vm51, %v50
  // Predicated region
  $region10: #{tpu_custom_call.1} parent=0 // pred_check
    _
  $region11: #{tpu_custom_call.1} parent=0 // pred_check_branch
    %54 = sbr.rel (0) target = $region13
  $region12: #{tpu_custom_call.1} parent=0 // pred_region
    _
  $region13: #{tpu_custom_call.1} parent=0 // pred_fallthru
    _
  // Predicated region
  $region14: #{tpu_custom_call.1} parent=0 // pred_check
    _
  $region15: #{tpu_custom_call.1} parent=0 // pred_check_branch
    %56 = sbr.rel (0) target = $region17
  $region16: #{tpu_custom_call.1} parent=0 // pred_region
    _
  $region17: #{tpu_custom_call.1} parent=0 // pred_fallthru
    _

</llo_original>
